<compile_context>
chip_gen: v5e
topology: v5e:2x2
jax: 0.10.0
libtpu: 0.0.40
codegen_flags: <defaults>
</compile_context>

<pallas_src>
import functools

import jax
import jax.numpy as jnp
from jax.experimental import pallas as pl
from jax.experimental.pallas import tpu as pltpu


# ----------------------------- helpers -------------------------------------


def _round_up(x, mult):
    return ((x + mult - 1) // mult) * mult


def _choose_tk(n, m, max_feat_bytes=16 * 1024 * 1024):
    """Pick a reduction-tile size TK (multiple of 128).

    Keeps the double-buffered (N, TK) f32 feature block under max_feat_bytes
    so the kernel stays within VMEM budgets on all generations (incl. v7x's
    64 MiB), while preferring large tiles for DMA efficiency.
    """
    m128 = _round_up(max(m, 1), 128)
    # 2 buffers * 4 bytes * n * tk  <=  max_feat_bytes
    cap = max(128, (max_feat_bytes // (2 * 4 * max(n, 1))) // 128 * 128)
    return min(m128, 2048, cap)


_COMPILER_PARAMS = pltpu.CompilerParams(
    dimension_semantics=("arbitrary",),          # reduction axis
    vmem_limit_bytes=64 * 1024 * 1024,
)


def _prep_feats(x):
    """Reshape NCHW -> (N, M) and zero-pad M to a multiple of TK."""
    bs, ch, h, w = x.shape
    n, m = bs * ch, h * w
    feats = x.reshape(n, m).astype(jnp.float32)
    tk = _choose_tk(n, m)
    m_pad = _round_up(m, tk)
    if m_pad != m:
        # zero columns contribute nothing to feats @ feats.T
        feats = jnp.pad(feats, ((0, 0), (0, m_pad - m)))
    num_k = m_pad // tk
    scale = 1.0 / float(bs * ch * h * w)
    return feats, n, tk, num_k, scale


# ----------------------------- kernels ------------------------------------


def _gram_kernel(feats_ref, gram_ref, acc_ref, *, scale):
    """Accumulate feats @ feats.T over K chunks; scale + store on last step."""
    k = pl.program_id(0)

    @pl.when(k == 0)
    def _():
        acc_ref[...] = jnp.zeros_like(acc_ref)

    f = feats_ref[...]
    # Contract lane-vs-lane: (N, TK) x (N, TK) -> (N, N), no feats.T relayout.
    acc_ref[...] += jax.lax.dot_general(
        f, f,
        dimension_numbers=(((1,), (1,)), ((), ())),
        preferred_element_type=jnp.float32,
    )

    @pl.when(k == pl.num_programs(0) - 1)
    def _():
        gram_ref[...] = acc_ref[...] * scale


def _style_loss_kernel(feats_ref, target_ref, loss_ref, acc_ref, *,
                       scale, inv_numel):
    """Gram accumulation over K chunks; MSE vs. target on last step only."""
    k = pl.program_id(0)

    @pl.when(k == 0)
    def _():
        acc_ref[...] = jnp.zeros_like(acc_ref)

    f = feats_ref[...]
    acc_ref[...] += jax.lax.dot_general(
        f, f,
        dimension_numbers=(((1,), (1,)), ((), ())),
        preferred_element_type=jnp.float32,
    )

    @pl.when(k == pl.num_programs(0) - 1)
    def _():
        diff = acc_ref[...] * scale - target_ref[...]
        # mean over all N*N elements (F.mse_loss default 'mean')
        loss_ref[0, 0] = jnp.sum(diff * diff) * inv_numel


# ----------------------------- wrappers ------------------------------------


def gram_matrix(x):
    """x: (bs, ch, h, w) float32 -> Gram matrix (bs*ch, bs*ch) float32."""
    feats, n, tk, num_k, scale = _prep_feats(x)

    return pl.pallas_call(
        functools.partial(_gram_kernel, scale=scale),
        out_shape=jax.ShapeDtypeStruct((n, n), jnp.float32),
        grid_spec=pltpu.PrefetchScalarGridSpec(
            num_scalar_prefetch=0,
            grid=(num_k,),
            in_specs=[pl.BlockSpec((n, tk), lambda k: (0, k))],
            out_specs=pl.BlockSpec((n, n), lambda k: (0, 0)),
            scratch_shapes=[pltpu.VMEM((n, n), jnp.float32)],
        ),
        compiler_params=_COMPILER_PARAMS,
    )(feats)


def style_loss_forward(x, target_gram):
    """Equivalent of StyleLoss.forward.

    Returns (inp, loss) where loss = mse(gram(inp), target_gram) and inp is
    passed through unchanged (PyTorch module returns inp and stores loss).
    Only the scalar loss leaves the kernel; the Gram matrix stays in VMEM.
    """
    feats, n, tk, num_k, scale = _prep_feats(x)
    inv_numel = 1.0 / float(n * n)

    loss = pl.pallas_call(
        functools.partial(_style_loss_kernel, scale=scale, inv_numel=inv_numel),
        out_shape=jax.ShapeDtypeStruct((1, 1), jnp.float32),
        grid_spec=pltpu.PrefetchScalarGridSpec(
            num_scalar_prefetch=0,
            grid=(num_k,),
            in_specs=[
                pl.BlockSpec((n, tk), lambda k: (0, k)),   # feature chunk
                pl.BlockSpec((n, n), lambda k: (0, 0)),    # resident target
            ],
            out_specs=pl.BlockSpec((1, 1), lambda k: (0, 0)),
            scratch_shapes=[pltpu.VMEM((n, n), jnp.float32)],
        ),
        compiler_params=_COMPILER_PARAMS,
    )(feats, target_gram.astype(jnp.float32))

    return x, loss[0, 0]


class StyleLoss:
    """JAX/Pallas port of the PyTorch StyleLoss module."""

    def __init__(self, target):
        # target: (bs, ch, h, w); detached (no grad tracking in this port).
        self.target = gram_matrix(target)
        self.loss = None

    def __call__(self, inp):
        out, self.loss = style_loss_forward(inp, self.target)
        return out


# ----------------------------- demo / check ---------------------------------


if __name__ == "__main__":
    key = jax.random.PRNGKey(0)
    k_t, k_x = jax.random.split(key)

    bs, ch, h, w = 2, 4, 16, 16
    target_feat = jax.random.normal(k_t, (bs, ch, h, w), dtype=jnp.float32)
    x = jax.random.normal(k_x, (bs, ch, h, w), dtype=jnp.float32)

    module = StyleLoss(target_feat)
    out = module(x)
    out = jax.block_until_ready(out)
    loss = jax.block_until_ready(module.loss)

    # reference check in plain JAX
    def ref_gram(a):
        b, c, hh, ww = a.shape
        f = a.reshape(b * c, hh * ww)
        return (f @ f.T) / (b * c * hh * ww)

    ref_loss = jnp.mean((ref_gram(x) - ref_gram(target_feat)) ** 2)
    assert jnp.allclose(out, x), "forward must return input unchanged"
    assert jnp.allclose(loss, ref_loss, rtol=1e-4, atol=1e-6), (loss, ref_loss)

    print("KERNEL_OK")
</pallas_src>

<mosaic_0001>
module attributes {stable_mosaic.version = 11 : i64} {
  func.func @_gram_kernel(%arg0: i32, %arg1: memref<8x256xf32, #tpu.memory_space<vmem>>, %arg2: memref<8x8xf32, #tpu.memory_space<vmem>>, %arg3: memref<8x8xf32, #tpu.memory_space<vmem>>) attributes {dimension_semantics = [#tpu.dimension_semantics<arbitrary>], iteration_bounds = array<i64: 1>, scalar_prefetch = 0 : i64, scratch_operands = 1 : i64, tpu.core_type = #tpu.core_type<tc>, window_params = [{transform_indices = @transform_0, window_bounds = array<i64: 8, 256>}, {pipeline_mode = #tpu.pipeline_mode<synchronous>, transform_indices = @transform_1, window_bounds = array<i64: 8, 8>}]} {
    %c0_i32 = arith.constant 0 : i32
    %0 = arith.cmpi eq, %arg0, %c0_i32 : i32
    %1 = arith.extui %0 : i1 to i32
    %c0_i32_0 = arith.constant 0 : i32
    %2 = arith.cmpi ne, %1, %c0_i32_0 : i32
    scf.if %2 {
      %cst_8 = arith.constant 0.000000e+00 : f32
      %11 = vector.broadcast %cst_8 : f32 to vector<8x8xf32>
      %c0_9 = arith.constant 0 : index
      %c0_10 = arith.constant 0 : index
      %12 = vector.load %arg3[%c0_9, %c0_10] : memref<8x8xf32, #tpu.memory_space<vmem>>, vector<8x8xf32>
      tpu.vector_store %arg3[%c0_9, %c0_10], %11 {strides = array<i32>} : memref<8x8xf32, #tpu.memory_space<vmem>>, vector<8x8xf32>,
    } else {
    }
    %c0 = arith.constant 0 : index
    %c0_1 = arith.constant 0 : index
    %3 = vector.load %arg1[%c0, %c0_1] : memref<8x256xf32, #tpu.memory_space<vmem>>, vector<8x256xf32>
    %c0_2 = arith.constant 0 : index
    %c0_3 = arith.constant 0 : index
    %4 = vector.load %arg3[%c0_2, %c0_3] : memref<8x8xf32, #tpu.memory_space<vmem>>, vector<8x8xf32>
    %cst = arith.constant dense<0.000000e+00> : vector<8x8xf32>
    %5 = tpu.matmul %3, %3, %cst {dimension_numbers = #tpu.dot_dimension_numbers<[1], [1], [0], [0], [0, 0, 1, 0], [], []>} : vector<8x256xf32>, vector<8x256xf32>, vector<8x8xf32> -> vector<8x8xf32>
    %6 = arith.addf %4, %5 : vector<8x8xf32>
    %c0_4 = arith.constant 0 : index
    %c0_5 = arith.constant 0 : index
    %7 = vector.load %arg3[%c0_4, %c0_5] : memref<8x8xf32, #tpu.memory_space<vmem>>, vector<8x8xf32>
    tpu.vector_store %arg3[%c0_4, %c0_5], %6 {strides = array<i32>} : memref<8x8xf32, #tpu.memory_space<vmem>>, vector<8x8xf32>,
    %c0_i32_6 = arith.constant 0 : i32
    %8 = arith.cmpi eq, %arg0, %c0_i32_6 : i32
    %9 = arith.extui %8 : i1 to i32
    %c0_i32_7 = arith.constant 0 : i32
    %10 = arith.cmpi ne, %9, %c0_i32_7 : i32
    scf.if %10 {
      %c0_8 = arith.constant 0 : index
      %c0_9 = arith.constant 0 : index
      %11 = vector.load %arg3[%c0_8, %c0_9] : memref<8x8xf32, #tpu.memory_space<vmem>>, vector<8x8xf32>
      %cst_10 = arith.constant 4.8828125E-4 : f32
      %12 = vector.broadcast %cst_10 : f32 to vector<8x8xf32>
      %13 = arith.mulf %11, %12 : vector<8x8xf32>
      %c0_11 = arith.constant 0 : index
      %c0_12 = arith.constant 0 : index
      %14 = vector.load %arg2[%c0_11, %c0_12] : memref<8x8xf32, #tpu.memory_space<vmem>>, vector<8x8xf32>
      tpu.vector_store %arg2[%c0_11, %c0_12], %13 {strides = array<i32>} : memref<8x8xf32, #tpu.memory_space<vmem>>, vector<8x8xf32>,
    } else {
    }
    return
  }
  func.func @transform_0(%arg0: i32) -> (i32, i32) {
    %c0_i32 = arith.constant 0 : i32
    %c0_i32_0 = arith.constant 0 : i32
    return %c0_i32, %arg0 : i32, i32
  }
  func.func @transform_1(%arg0: i32) -> (i32, i32) {
    %c0_i32 = arith.constant 0 : i32
    %c0_i32_0 = arith.constant 0 : i32
    %c0_i32_1 = arith.constant 0 : i32
    return %c0_i32, %c0_i32_0 : i32, i32
  }
}

</mosaic_0001>

<llo_original>
// kernel: tpu_custom_call.1
$region0: #{tpu_custom_call.1}
  #allocation0 [shape = 'u32[]', space=smem, size = 0x4, offset = 0x4, fixed_abs, tag = 'smem constant byte address 0x4 - core index']
  #allocation1 [shape = 'u32[72,128]{1,0:T(1,128)}', space=vmem, size = 0x9000, scoped, tag = 'internal scratch']
  #allocation2 [shape = 'f32[8,8]{1,0:T(8,128)}', space=vmem, size = 0x1000, scoped, tag = 'scratch operand']
  %s0 = inlined_call_operand.hbm [shape: f32[8,256], index: 0, kind: input, shape index: {}]
  %s1 = inlined_call_operand.hbm [shape: f32[8,8], index: 1, kind: output, shape index: {}]
  %s2 = sld [smem:[#allocation0]]
  $region26: #{tpu_custom_call.1} parent=0
    _
  %s4 = ssub.s32 1, %s2
  %s5 = scalar_select 0, %s4, %s2
  $region1: #{tpu_custom_call.1} parent=0
    #allocation3 [shape = 'u8[8192]{0}', space=vmem, size = 0x2000, scoped, tag = 'input window, operand 0, single buffered']
    #allocation4 [shape = 's32[1]{0}', space=sflag, size = 0x4, scoped, tag = 'scoped memory for tpu_custom_call.1']
    #allocation5 [shape = 's32[1]{0}', space=sflag, size = 0x4, scoped, tag = 'scoped memory for tpu_custom_call.1']
    #allocation6 [shape = 'u8[4096]{0}', space=vmem, size = 0x1000, scoped, tag = 'output window, operand 0, single buffered']
    %6 = vsyncpa [#allocation4], 0
    %7 = vsyncpa [#allocation5], 0
    // Predicated region
    $region2: #{tpu_custom_call.1} parent=1 // pred_check
      _
    $region3: #{tpu_custom_call.1} parent=1 // pred_check_branch
      %9 = sbr.rel (0) target = $region5
    $region4: #{tpu_custom_call.1} parent=1 // pred_region
      %11 = vsyncadd [#allocation4], 0
      %s13 = sshll.u32 %s0, 4
      %s14 = int_to_ptr.hbm [resolvable:$true] %s13
      %s15 = sshll.u32 [#allocation3], 4
      %s16 = int_to_ptr.vmem [resolvable:$true] %s15
      %18 = dma.hbm_to_vmem [thread:$0]  %s14, 256, %s16, [#allocation4]
    $region5: #{tpu_custom_call.1} parent=1 // pred_fallthru
      _
    // Predicated region
    $region6: #{tpu_custom_call.1} parent=1 // pred_check
      _
    $region7: #{tpu_custom_call.1} parent=1 // pred_check_branch
      %20 = sbr.rel (0) target = $region9
    $region8: #{tpu_custom_call.1} parent=1 // pred_region
      %22 = dma.done [#allocation4], 256
    $region9: #{tpu_custom_call.1} parent=1 // pred_fallthru
      _
    %p23 = scmp.eq.s32.totalorder 0, 0
    // Predicated region
    $region10: #{tpu_custom_call.1} parent=1 // pred_check
      %p24 = pneg %p23
    $region11: #{tpu_custom_call.1} parent=1 // pred_check_branch
      %26 = sbr.rel (%p24) target = $region13
    $region12: #{tpu_custom_call.1} parent=1 // pred_region
      %vm27 = vcmask 64512
      %28 = vst.msk [vmem:[#allocation2] sm:$0xff] %vm27, 0.0
    $region13: #{tpu_custom_call.1} parent=1 // pred_fallthru
      _
    %v29 = vld [vmem:[#allocation3] sm:$0xff]
    %v30 = vld [vmem:[#allocation3 + $0x8] sm:$0xff]
    %v31 = vld [vmem:[#allocation2] sm:$0xff]
    %32 = vmatpush.xpose.msra.mxu0 0.0
    %33 = vmatpush.xpose.msra.mxu0 0.0
    %34 = vmatpush.xpose.msra.mxu0 0.0
    %35 = vmatpush.xpose.msra.mxu0 0.0
    %36 = vmatpush.xpose.msra.mxu0 0.0
    %37 = vmatpush.xpose.msra.mxu0 0.0
    %38 = vmatpush.xpose.msra.mxu0 0.0
    %39 = vmatpush.xpose.msra.mxu0 0.0
    %40 = vmatpush.xpose.msra.mxu0 0.0
    %41 = vmatpush.xpose.msra.mxu0 0.0
    %42 = vmatpush.xpose.msra.mxu0 0.0
    %43 = vmatpush.xpose.msra.mxu0 0.0
    %44 = vmatpush.xpose.msra.mxu0 0.0
    %45 = vmatpush.xpose.msra.mxu0 0.0
    %46 = vmatpush.xpose.msra.mxu0 0.0
    %47 = vmatpush.xpose.msra.mxu0 %v29
    %48 = vmatmul.f32.gmra.mxu0 %v29
    %v49 = vpop.f32.mrf.mxu0
    %v50 = vadd.f32 0.0, %v49
    %51 = vdwg.mxu0
    %52 = vmatpush.xpose.msra.mxu0 0.0
    %53 = vmatpush.xpose.msra.mxu0 0.0
    %54 = vmatpush.xpose.msra.mxu0 0.0
    %55 = vmatpush.xpose.msra.mxu0 0.0
    %56 = vmatpush.xpose.msra.mxu0 0.0
    %57 = vmatpush.xpose.msra.mxu0 0.0
    %58 = vmatpush.xpose.msra.mxu0 0.0
    %59 = vmatpush.xpose.msra.mxu0 0.0
    %60 = vmatpush.xpose.msra.mxu0 0.0
    %61 = vmatpush.xpose.msra.mxu0 0.0
    %62 = vmatpush.xpose.msra.mxu0 0.0
    %63 = vmatpush.xpose.msra.mxu0 0.0
    %64 = vmatpush.xpose.msra.mxu0 0.0
    %65 = vmatpush.xpose.msra.mxu0 0.0
    %66 = vmatpush.xpose.msra.mxu0 0.0
    %67 = vmatpush.xpose.msra.mxu0 %v30
    %68 = vmatmul.f32.gmra.mxu0 %v30
    %v69 = vpop.f32.mrf.mxu0
    %v70 = vadd.f32 %v50, %v69
    %71 = vdwg.mxu0
    %v72 = vadd.f32 %v31, %v70
    %vm73 = vcmask 64512
    %74 = vst.msk [vmem:[#allocation2] sm:$0xff] %vm73, %v72
    // Predicated region
    $region14: #{tpu_custom_call.1} parent=1 // pred_check
      %p75 = pneg %p23
    $region15: #{tpu_custom_call.1} parent=1 // pred_check_branch
      %77 = sbr.rel (%p75) target = $region17
    $region16: #{tpu_custom_call.1} parent=1 // pred_region
      %v78 = vld [vmem:[#allocation2] sm:$0xff]
      %v79 = vmul.f32 %v78, 0.00048828125
      %80 = vst.msk [vmem:[#allocation6] sm:$0xff] %vm73, %v79
    $region17: #{tpu_custom_call.1} parent=1 // pred_fallthru
      _
    // Predicated region
    $region18: #{tpu_custom_call.1} parent=1 // pred_check
      _
    $region19: #{tpu_custom_call.1} parent=1 // pred_check_branch
      %82 = sbr.rel (0) target = $region21
    $region20: #{tpu_custom_call.1} parent=1 // pred_region
      %84 = vsyncadd [#allocation5], 0
      %s86 = sshll.u32 [#allocation6], 4
      %s87 = int_to_ptr.vmem [resolvable:$true] %s86
      %s88 = sshll.u32 %s1, 4
      %s89 = int_to_ptr.hbm [resolvable:$true] %s88
      %91 = dma.vmem_to_hbm [thread:$0]  %s87, 128, %s89, [#allocation5]
    $region21: #{tpu_custom_call.1} parent=1 // pred_fallthru
      _
    // Predicated region
    $region22: #{tpu_custom_call.1} parent=1 // pred_check
      _
    $region23: #{tpu_custom_call.1} parent=1 // pred_check_branch
      %93 = sbr.rel (0) target = $region25
    $region24: #{tpu_custom_call.1} parent=1 // pred_region
      %95 = dma.done [#allocation5], 128
    $region25: #{tpu_custom_call.1} parent=1 // pred_fallthru
      _
    %96 = vsyncpa [#allocation4], 1
    %97 = vsyncpa [#allocation5], 1

</llo_original>
